<compile_context>
chip_gen: v5e
topology: v5e:2x2
jax: 0.10.0
libtpu: 0.0.40
codegen_flags: <defaults>
</compile_context>

<pallas_src>
import functools
import math

import jax
import jax.numpy as jnp
from jax.experimental import pallas as pl
from jax.experimental.pallas import tpu as pltpu

_SUBLANES = 8
_LANES = 128
# ~4 MiB per block: with input+output each double-buffered -> ~16 MiB VMEM,
# which fits the 32 MiB scoped limit requested below on v5e/v6e/v7x.
_TARGET_BLOCK_BYTES = 4 * 1024 * 1024
# Never shrink below ~1 MiB once the input is large (avoids per-step-overhead domination).
_MIN_BLOCK_BYTES = 1 * 1024 * 1024


def _quant_kernel(x_ref, o_ref, *, a_bit: int):
    # Load in native dtype, do the ~5 VALU ops in f32 vregs, store back in native dtype.
    x = x_ref[...].astype(jnp.float32)
    xc = jnp.clip(x, 0.0, 1.0)
    if a_bit == 1:
        q = jnp.sign(xc)                      # 0.0 for x <= 0, 1.0 otherwise (matches torch)
    else:
        n = float(2 ** a_bit - 1)
        q = jnp.round(xc * n) / n             # true divide for bit-exact parity with torch
    o_ref[...] = q.astype(o_ref.dtype)


def _round_up(x: int, m: int) -> int:
    return ((x + m - 1) // m) * m


def _choose_block_rows(rows: int, itemsize: int) -> int:
    bytes_per_row = _LANES * itemsize
    target = max(_SUBLANES, _TARGET_BLOCK_BYTES // bytes_per_row // _SUBLANES * _SUBLANES)
    floor = max(_SUBLANES, _MIN_BLOCK_BYTES // bytes_per_row // _SUBLANES * _SUBLANES)
    if rows <= floor:
        # Small input: a single full-extent block (legal even when rows % 8 != 0).
        return rows
    # Large input: MB-scale blocks, but aim for >= ~4 grid steps so both v7x
    # TensorCores get work and the DMA pipeline stays more than one step deep.
    br = _round_up(pl.cdiv(rows, 4), _SUBLANES)
    return int(min(target, max(floor, br)))


def activation_quantize(x, a_bit: int = 4):
    """Forward pass of activation_quantize_fn."""
    assert a_bit <= 8 or a_bit == 32
    if a_bit == 32:
        return x  # identity: zero HBM traffic

    orig_shape = x.shape
    size = math.prod(orig_shape)
    if size == 0:
        return x

    flat = x.reshape(-1)
    pad = (-size) % _LANES                     # pad only to a lane multiple, only if needed
    if pad:
        flat = jnp.pad(flat, (0, pad))
    x2d = flat.reshape(-1, _LANES)             # lane-dense (rows, 128) slab, native dtype
    rows = x2d.shape[0]

    block_rows = _choose_block_rows(rows, x2d.dtype.itemsize)
    grid = (int(pl.cdiv(rows, block_rows)),)   # ragged last block is masked by Pallas

    out2d = pl.pallas_call(
        functools.partial(_quant_kernel, a_bit=a_bit),
        out_shape=jax.ShapeDtypeStruct((rows, _LANES), x2d.dtype),
        grid=grid,
        in_specs=[pl.BlockSpec((block_rows, _LANES), lambda i: (i, 0))],
        out_specs=pl.BlockSpec((block_rows, _LANES), lambda i: (i, 0)),
        compiler_params=pltpu.CompilerParams(
            dimension_semantics=("parallel",),
            vmem_limit_bytes=32 * 1024 * 1024,
        ),
    )(x2d)

    if pad:
        return out2d.reshape(-1)[:size].reshape(orig_shape)
    return out2d.reshape(orig_shape)


def _reference(x, a_bit):
    if a_bit == 32:
        return x
    xc = jnp.clip(x.astype(jnp.float32), 0.0, 1.0)
    if a_bit == 1:
        q = jnp.sign(xc)
    else:
        n = float(2 ** a_bit - 1)
        q = jnp.round(xc * n) / n
    return q.astype(x.dtype)


if __name__ == "__main__":
    key = jax.random.PRNGKey(0)

    # Primary check: NCHW f32 activations, 4-bit quantization.
    x = jax.random.normal(key, (2, 4, 16, 16), dtype=jnp.float32)
    y = jax.block_until_ready(activation_quantize(x, a_bit=4))
    assert y.shape == x.shape and y.dtype == x.dtype
    assert jnp.array_equal(y, _reference(x, 4)), "mismatch vs reference (a_bit=4)"

    # Exercise the padded (size % 128 != 0) path and the 1-bit path.
    x2 = jax.random.normal(jax.random.PRNGKey(1), (3, 5, 7, 11), dtype=jnp.float32)
    y2 = jax.block_until_ready(activation_quantize(x2, a_bit=1))
    assert jnp.array_equal(y2, _reference(x2, 1)), "mismatch vs reference (a_bit=1)"

    # bf16 activations keep their dtype end-to-end (halves HBM traffic).
    x3 = jax.random.normal(jax.random.PRNGKey(2), (2, 4, 16, 16), dtype=jnp.bfloat16)
    y3 = jax.block_until_ready(activation_quantize(x3, a_bit=4))
    assert y3.dtype == jnp.bfloat16
    assert jnp.array_equal(y3, _reference(x3, 4)), "mismatch vs reference (bf16)"

    # a_bit == 32 is a pure identity early-return (no pad/reshape/kernel).
    y4 = activation_quantize(x, a_bit=32)
    assert y4 is x

    print("KERNEL_OK")
</pallas_src>

<mosaic_0001>
module attributes {stable_mosaic.version = 11 : i64} {
  func.func @_quant_kernel(%arg0: i32, %arg1: memref<16x128xf32, #tpu.memory_space<vmem>>, %arg2: memref<16x128xf32, #tpu.memory_space<vmem>>) attributes {dimension_semantics = [#tpu.dimension_semantics<parallel>], iteration_bounds = array<i64: 1>, scalar_prefetch = 0 : i64, scratch_operands = 0 : i64, tpu.core_type = #tpu.core_type<tc>, window_params = [{transform_indices = @transform_0, window_bounds = array<i64: 16, 128>}, {transform_indices = @transform_1, window_bounds = array<i64: 16, 128>}]} {
    %c0 = arith.constant 0 : index
    %c0_0 = arith.constant 0 : index
    %0 = vector.load %arg1[%c0, %c0_0] : memref<16x128xf32, #tpu.memory_space<vmem>>, vector<16x128xf32>
    %cst = arith.constant 0.000000e+00 : f32
    %cst_1 = arith.constant 1.000000e+00 : f32
    %1 = vector.broadcast %cst : f32 to vector<16x128xf32>
    %2 = arith.maximumf %1, %0 : vector<16x128xf32>
    %3 = vector.broadcast %cst_1 : f32 to vector<16x128xf32>
    %4 = arith.minimumf %3, %2 : vector<16x128xf32>
    %cst_2 = arith.constant 1.500000e+01 : f32
    %5 = vector.broadcast %cst_2 : f32 to vector<16x128xf32>
    %6 = arith.mulf %4, %5 : vector<16x128xf32>
    %7 = math.roundeven %6 : vector<16x128xf32>
    %cst_3 = arith.constant 1.500000e+01 : f32
    %8 = vector.broadcast %cst_3 : f32 to vector<16x128xf32>
    %9 = arith.divf %7, %8 : vector<16x128xf32>
    %c0_4 = arith.constant 0 : index
    %c0_5 = arith.constant 0 : index
    %10 = vector.load %arg2[%c0_4, %c0_5] : memref<16x128xf32, #tpu.memory_space<vmem>>, vector<16x128xf32>
    tpu.vector_store %arg2[%c0_4, %c0_5], %9 {strides = array<i32>} : memref<16x128xf32, #tpu.memory_space<vmem>>, vector<16x128xf32>,
    return
  }
  func.func @transform_0(%arg0: i32) -> (i32, i32) {
    %c0_i32 = arith.constant 0 : i32
    %c0_i32_0 = arith.constant 0 : i32
    return %arg0, %c0_i32 : i32, i32
  }
  func.func @transform_1(%arg0: i32) -> (i32, i32) {
    %c0_i32 = arith.constant 0 : i32
    %c0_i32_0 = arith.constant 0 : i32
    return %arg0, %c0_i32 : i32, i32
  }
}

</mosaic_0001>

<llo_original>
// kernel: tpu_custom_call.1
$region0: #{tpu_custom_call.1}
  #allocation0 [shape = 'u32[]', space=smem, size = 0x4, offset = 0x4, fixed_abs, tag = 'smem constant byte address 0x4 - core index']
  #allocation1 [shape = 'u32[72,128]{1,0:T(1,128)}', space=vmem, size = 0x9000, scoped, tag = 'internal scratch']
  %s0 = inlined_call_operand.hbm [shape: f32[16,128], index: 0, kind: input, shape index: {}]
  %s1 = inlined_call_operand.hbm [shape: f32[16,128], index: 1, kind: output, shape index: {}]
  %s2 = sld [smem:[#allocation0]]
  $region18: #{tpu_custom_call.1} parent=0
    _
  %s4 = ssub.s32 1, %s2
  %s5 = scalar_select 0, %s4, %s2
  $region1: #{tpu_custom_call.1} parent=0
    #allocation2 [shape = 'u8[8192]{0}', space=vmem, size = 0x2000, scoped, tag = 'input window, operand 0, single buffered']
    #allocation3 [shape = 's32[1]{0}', space=sflag, size = 0x4, scoped, tag = 'scoped memory for tpu_custom_call.1']
    #allocation4 [shape = 's32[1]{0}', space=sflag, size = 0x4, scoped, tag = 'scoped memory for tpu_custom_call.1']
    #allocation5 [shape = 'u8[8192]{0}', space=vmem, size = 0x2000, scoped, tag = 'output window, operand 0, single buffered']
    %6 = vsyncpa [#allocation3], 0
    %7 = vsyncpa [#allocation4], 0
    // Predicated region
    $region2: #{tpu_custom_call.1} parent=1 // pred_check
      _
    $region3: #{tpu_custom_call.1} parent=1 // pred_check_branch
      %9 = sbr.rel (0) target = $region5
    $region4: #{tpu_custom_call.1} parent=1 // pred_region
      %11 = vsyncadd [#allocation3], 0
      %s12 = sshll.u32 %s0, 4
      %s13 = int_to_ptr.hbm [resolvable:$true] %s12
      %s14 = sshll.u32 [#allocation2], 4
      %s15 = int_to_ptr.vmem [resolvable:$true] %s14
      %20 = dma.hbm_to_vmem [thread:$0]  %s13, 256, %s15, [#allocation3], 128, 128, 8
    $region5: #{tpu_custom_call.1} parent=1 // pred_fallthru
      _
    // Predicated region
    $region6: #{tpu_custom_call.1} parent=1 // pred_check
      _
    $region7: #{tpu_custom_call.1} parent=1 // pred_check_branch
      %22 = sbr.rel (0) target = $region9
    $region8: #{tpu_custom_call.1} parent=1 // pred_region
      %24 = dma.done [#allocation3], 256
    $region9: #{tpu_custom_call.1} parent=1 // pred_fallthru
      _
    %v25 = vld [vmem:[#allocation2] sm:$0xff]
    %v26 = vld [vmem:[#allocation2 + $0x8] sm:$0xff]
    %v27 = vmax.f32 %v25, 0.0
    %v28 = vmax.f32 %v26, 0.0
    %v29 = vmin.f32 %v27, 1.0
    %v30 = vmin.f32 %v28, 1.0
    %v31 = vmul.f32 %v29, 15.0
    %v32 = vmul.f32 %v30, 15.0
    %v33 = vround.ne.pseudo %v31
    %v34 = vround.ne.pseudo %v32
    %v35 = vrcp.pop 15.0
    %v36 = vmul.f32 15.0, %v35
    %v37 = vsub.f32 1.0, %v36
    %v38 = vmul.f32 %v35, %v37
    %v39 = vadd.f32 %v35, %v38
    %vm40 = vweird.f32 %v35
    %v41 = vsel %vm40, %v35, %v39
    %v42 = vmul.f32 %v33, %v41
    %v43 = vmul.f32 %v34, %v41
    %44 = vst [vmem:[#allocation5] sm:$0xff] %v42
    %45 = vst [vmem:[#allocation5 + $0x8] sm:$0xff] %v43
    // Predicated region
    $region10: #{tpu_custom_call.1} parent=1 // pred_check
      _
    $region11: #{tpu_custom_call.1} parent=1 // pred_check_branch
      %47 = sbr.rel (0) target = $region13
    $region12: #{tpu_custom_call.1} parent=1 // pred_region
      %49 = vsyncadd [#allocation4], 0
      %s50 = sshll.u32 [#allocation5], 4
      %s51 = int_to_ptr.vmem [resolvable:$true] %s50
      %s52 = sshll.u32 %s1, 4
      %s53 = int_to_ptr.hbm [resolvable:$true] %s52
      %58 = dma.vmem_to_hbm [thread:$0]  %s51, 256, %s53, [#allocation4], 128, 128, 8
    $region13: #{tpu_custom_call.1} parent=1 // pred_fallthru
      _
    // Predicated region
    $region14: #{tpu_custom_call.1} parent=1 // pred_check
      _
    $region15: #{tpu_custom_call.1} parent=1 // pred_check_branch
      %60 = sbr.rel (0) target = $region17
    $region16: #{tpu_custom_call.1} parent=1 // pred_region
      %62 = dma.done [#allocation4], 256
    $region17: #{tpu_custom_call.1} parent=1 // pred_fallthru
      _
    %63 = vsyncpa [#allocation3], 1
    %64 = vsyncpa [#allocation4], 1

</llo_original>
